<compile_context>
chip_gen: v7x
topology: tpu7x:2x2x1
jax: 0.10.0
libtpu: 0.0.40
codegen_flags: <defaults>
</compile_context>

<pallas_src>
import jax
import jax.numpy as jnp
from jax.experimental import pallas as pl
from jax.experimental.pallas import tpu as pltpu

HIDDEN = 24
TB_MAX = 2048                  # max batch rows per grid step
SPLIT_ROWS = 1024              # above this many rows, force >= 2 grid steps (v7x megacore)
VMEM_STREAM_BUDGET = 8 << 20   # byte budget for double-buffered x/out tiles (safe on v5e's 16 MiB)


def _round_up(n, m):
    return ((n + m - 1) // m) * m


def _pad_to(a, shape):
    return jnp.pad(a, [(0, t - s) for s, t in zip(a.shape, shape)])


def mlp_kernel(x_ref, w1_ref, b1_ref, w2_ref, b2_ref, o_ref):
    # hidden = relu(x @ W1 + b1); hidden lanes beyond the real 24 are zero-padded.
    h = jnp.dot(x_ref[...], w1_ref[...], preferred_element_type=jnp.float32)
    h = jnp.maximum(h + b1_ref[...], 0.0)
    # out = h @ W2 + b2 over a 128-multiple lane width (W2/b2 are VMEM-resident,
    # zero-padded), then store only the real out_size lanes to the narrow HBM
    # output.  The masked store is cheap: the kernel is HBM-bound.
    out = jnp.dot(h, w2_ref[...], preferred_element_type=jnp.float32) + b2_ref[...]
    o_ref[...] = out[:, : o_ref.shape[-1]].astype(o_ref.dtype)


def neural_network_forward(x, w1, b1, w2, b2):
    """Pallas forward of: Linear(in, 24) -> ReLU -> Linear(24, out).

    x  : (B, input_size)        float32
    w1 : (input_size, 24)       float32   (transposed PyTorch weight)
    b1 : (24,) or (1, 24)       float32
    w2 : (24, output_size)      float32   (transposed PyTorch weight)
    b2 : (out,) or (1, out)     float32
    returns (B, output_size) float32
    """
    B, in_size = x.shape
    hidden = w1.shape[1]
    out_size = w2.shape[1]
    f32 = jnp.float32

    # --- pad params (zeros are mathematically inert) ---
    hid_p = _round_up(hidden, 32)            # hidden padded only to 32 lanes
    out_p = _round_up(out_size, 128)         # W2/b2 lane-padded in VMEM only (tiny)
    w1_p = _pad_to(w1.astype(f32), (in_size, hid_p))
    b1_p = _pad_to(jnp.reshape(b1, (1, hidden)).astype(f32), (1, hid_p))
    w2_p = _pad_to(w2.astype(f32), (hid_p, out_p))
    b2_p = _pad_to(jnp.reshape(b2, (1, out_size)).astype(f32), (1, out_p))

    # --- choose batch tile: as large as possible (amortize ~0.35 us/step grid
    #     overhead) but within the VMEM streaming budget, and split big batches
    #     into >= 2 steps so both v7x TensorCores get work. ---
    bytes_per_row = 2 * 4 * (in_size + out_size)          # x + out, double-buffered, f32
    tb_cap = max(8, min(TB_MAX, (VMEM_STREAM_BUDGET // bytes_per_row) // 8 * 8))

    Bp = _round_up(B, 8)
    n_tiles = max(int(pl.cdiv(Bp, tb_cap)), 2 if Bp >= SPLIT_ROWS else 1)
    tb = _round_up(int(pl.cdiv(Bp, n_tiles)), 8)
    Bp = tb * n_tiles

    x_in = x.astype(f32)
    if Bp != B:
        # Only pad when the grid actually needs it (ragged batch); padded rows
        # produce garbage that is sliced off below.
        x_in = jnp.pad(x_in, ((0, Bp - B), (0, 0)))

    out = pl.pallas_call(
        mlp_kernel,
        out_shape=jax.ShapeDtypeStruct((Bp, out_size), f32),
        grid_spec=pltpu.PrefetchScalarGridSpec(
            num_scalar_prefetch=0,
            grid=(Bp // tb,),
            in_specs=[
                # x streamed (double-buffered) along the batch axis
                pl.BlockSpec((tb, in_size), lambda i: (i, 0)),
                # weights / biases: same block every step -> VMEM-resident
                pl.BlockSpec((in_size, hid_p), lambda i: (0, 0)),
                pl.BlockSpec((1, hid_p), lambda i: (0, 0)),
                pl.BlockSpec((hid_p, out_p), lambda i: (0, 0)),
                pl.BlockSpec((1, out_p), lambda i: (0, 0)),
            ],
            # narrow (true out_size) HBM output -> minimal writeback traffic
            out_specs=pl.BlockSpec((tb, out_size), lambda i: (i, 0)),
        ),
        compiler_params=pltpu.CompilerParams(
            dimension_semantics=("parallel",),  # batch axis split across TCs on v7x
        ),
    )(x_in, w1_p, b1_p, w2_p, b2_p)

    return out if Bp == B else out[:B]


def init_params(key, input_size, output_size, hidden=HIDDEN):
    """Deterministic init mimicking PyTorch nn.Linear default U[-1/sqrt(fan_in), 1/sqrt(fan_in)]."""
    k1, k2, k3, k4 = jax.random.split(key, 4)
    bound1 = 1.0 / jnp.sqrt(jnp.float32(input_size))
    bound2 = 1.0 / jnp.sqrt(jnp.float32(hidden))
    w1 = jax.random.uniform(k1, (input_size, hidden), jnp.float32, -bound1, bound1)
    b1 = jax.random.uniform(k2, (1, hidden), jnp.float32, -bound1, bound1)
    w2 = jax.random.uniform(k3, (hidden, output_size), jnp.float32, -bound2, bound2)
    b2 = jax.random.uniform(k4, (1, output_size), jnp.float32, -bound2, bound2)
    return w1, b1, w2, b2


# TODO(synk): loss_fn (MSE), Adam optimiser and checkpoint load/save are training-side
# state of the PyTorch module, not part of the forward pass, and are not implemented here.

if __name__ == "__main__":
    input_size = 32   # e.g. DQN state dimension
    output_size = 4   # e.g. number of actions

    key = jax.random.PRNGKey(0)
    kp, kx1, kx2, kx3 = jax.random.split(key, 4)
    w1, b1, w2, b2 = init_params(kp, input_size, output_size)

    def ref_fwd(x):
        return jnp.maximum(x @ w1 + b1, 0.0) @ w2 + b2

    # Small batch: single tile, no batch padding.
    x_small = jax.random.normal(kx1, (8, input_size), jnp.float32)
    out_small = jax.block_until_ready(neural_network_forward(x_small, w1, b1, w2, b2))
    assert out_small.shape == (8, output_size)
    assert jnp.allclose(out_small, ref_fwd(x_small), atol=1e-5, rtol=1e-5)

    # Ragged batch: exercises the 8-row padding + trailing slice path.
    x_ragged = jax.random.normal(kx2, (300, input_size), jnp.float32)
    out_ragged = jax.block_until_ready(neural_network_forward(x_ragged, w1, b1, w2, b2))
    assert out_ragged.shape == (300, output_size)
    assert jnp.allclose(out_ragged, ref_fwd(x_ragged), atol=1e-5, rtol=1e-5)

    # Larger batch: multi-step grid (>= 2 tiles -> v7x megacore split), no padding.
    x_big = jax.random.normal(kx3, (2048, input_size), jnp.float32)
    out_big = jax.block_until_ready(neural_network_forward(x_big, w1, b1, w2, b2))
    assert out_big.shape == (2048, output_size)
    assert jnp.allclose(out_big, ref_fwd(x_big), atol=1e-5, rtol=1e-5)

    print("KERNEL_OK")
</pallas_src>

<mosaic_0001>
module attributes {stable_mosaic.version = 11 : i64} {
  func.func @mlp_kernel(%arg0: i32, %arg1: memref<8x32xf32, #tpu.memory_space<vmem>>, %arg2: memref<32x32xf32, #tpu.memory_space<vmem>>, %arg3: memref<1x32xf32, #tpu.memory_space<vmem>>, %arg4: memref<32x128xf32, #tpu.memory_space<vmem>>, %arg5: memref<1x128xf32, #tpu.memory_space<vmem>>, %arg6: memref<8x4xf32, #tpu.memory_space<vmem>>) attributes {dimension_semantics = [#tpu.dimension_semantics<parallel>], iteration_bounds = array<i64: 1>, scalar_prefetch = 0 : i64, scratch_operands = 0 : i64, tpu.core_type = #tpu.core_type<tc>, window_params = [{transform_indices = @transform_0, window_bounds = array<i64: 8, 32>}, {pipeline_mode = #tpu.pipeline_mode<synchronous>, transform_indices = @transform_1, window_bounds = array<i64: 32, 32>}, {pipeline_mode = #tpu.pipeline_mode<synchronous>, transform_indices = @transform_2, window_bounds = array<i64: 1, 32>}, {pipeline_mode = #tpu.pipeline_mode<synchronous>, transform_indices = @transform_3, window_bounds = array<i64: 32, 128>}, {pipeline_mode = #tpu.pipeline_mode<synchronous>, transform_indices = @transform_4, window_bounds = array<i64: 1, 128>}, {transform_indices = @transform_5, window_bounds = array<i64: 8, 4>}]} {
    %c0 = arith.constant 0 : index
    %c0_0 = arith.constant 0 : index
    %0 = vector.load %arg1[%c0, %c0_0] : memref<8x32xf32, #tpu.memory_space<vmem>>, vector<8x32xf32>
    %c0_1 = arith.constant 0 : index
    %c0_2 = arith.constant 0 : index
    %1 = vector.load %arg2[%c0_1, %c0_2] : memref<32x32xf32, #tpu.memory_space<vmem>>, vector<32x32xf32>
    %cst = arith.constant dense<0.000000e+00> : vector<8x32xf32>
    %2 = tpu.matmul %0, %1, %cst {dimension_numbers = #tpu.dot_dimension_numbers<[1], [0], [0], [1], [0, 0, 1, 1], [], []>} : vector<8x32xf32>, vector<32x32xf32>, vector<8x32xf32> -> vector<8x32xf32>
    %c0_3 = arith.constant 0 : index
    %c0_4 = arith.constant 0 : index
    %3 = vector.load %arg3[%c0_3, %c0_4] : memref<1x32xf32, #tpu.memory_space<vmem>>, vector<1x32xf32>
    %4 = vector.broadcast %3 : vector<1x32xf32> to vector<8x32xf32>
    %5 = arith.addf %2, %4 : vector<8x32xf32>
    %cst_5 = arith.constant 0.000000e+00 : f32
    %6 = vector.broadcast %cst_5 : f32 to vector<8x32xf32>
    %7 = arith.maximumf %5, %6 : vector<8x32xf32>
    %c0_6 = arith.constant 0 : index
    %c0_7 = arith.constant 0 : index
    %8 = vector.load %arg4[%c0_6, %c0_7] : memref<32x128xf32, #tpu.memory_space<vmem>>, vector<32x128xf32>
    %cst_8 = arith.constant dense<0.000000e+00> : vector<8x128xf32>
    %9 = tpu.matmul %7, %8, %cst_8 {dimension_numbers = #tpu.dot_dimension_numbers<[1], [0], [0], [1], [0, 0, 1, 1], [], []>} : vector<8x32xf32>, vector<32x128xf32>, vector<8x128xf32> -> vector<8x128xf32>
    %c0_9 = arith.constant 0 : index
    %c0_10 = arith.constant 0 : index
    %10 = vector.load %arg5[%c0_9, %c0_10] : memref<1x128xf32, #tpu.memory_space<vmem>>, vector<1x128xf32>
    %11 = vector.broadcast %10 : vector<1x128xf32> to vector<8x128xf32>
    %12 = arith.addf %9, %11 : vector<8x128xf32>
    %13 = vector.extract_strided_slice %12 {offsets = [0, 0], sizes = [8, 4], strides = [1, 1]} : vector<8x128xf32> to vector<8x4xf32>
    %c0_11 = arith.constant 0 : index
    %c0_12 = arith.constant 0 : index
    %14 = vector.load %arg6[%c0_11, %c0_12] : memref<8x4xf32, #tpu.memory_space<vmem>>, vector<8x4xf32>
    tpu.vector_store %arg6[%c0_11, %c0_12], %13 {strides = array<i32>} : memref<8x4xf32, #tpu.memory_space<vmem>>, vector<8x4xf32>,
    return
  }
  func.func @transform_0(%arg0: i32) -> (i32, i32) {
    %c0_i32 = arith.constant 0 : i32
    %c0_i32_0 = arith.constant 0 : i32
    return %arg0, %c0_i32 : i32, i32
  }
  func.func @transform_1(%arg0: i32) -> (i32, i32) {
    %c0_i32 = arith.constant 0 : i32
    %c0_i32_0 = arith.constant 0 : i32
    %c0_i32_1 = arith.constant 0 : i32
    return %c0_i32, %c0_i32_0 : i32, i32
  }
  func.func @transform_2(%arg0: i32) -> (i32, i32) {
    %c0_i32 = arith.constant 0 : i32
    %c0_i32_0 = arith.constant 0 : i32
    %c0_i32_1 = arith.constant 0 : i32
    return %c0_i32, %c0_i32_0 : i32, i32
  }
  func.func @transform_3(%arg0: i32) -> (i32, i32) {
    %c0_i32 = arith.constant 0 : i32
    %c0_i32_0 = arith.constant 0 : i32
    %c0_i32_1 = arith.constant 0 : i32
    return %c0_i32, %c0_i32_0 : i32, i32
  }
  func.func @transform_4(%arg0: i32) -> (i32, i32) {
    %c0_i32 = arith.constant 0 : i32
    %c0_i32_0 = arith.constant 0 : i32
    %c0_i32_1 = arith.constant 0 : i32
    return %c0_i32, %c0_i32_0 : i32, i32
  }
  func.func @transform_5(%arg0: i32) -> (i32, i32) {
    %c0_i32 = arith.constant 0 : i32
    %c0_i32_0 = arith.constant 0 : i32
    return %arg0, %c0_i32 : i32, i32
  }
}

</mosaic_0001>

<llo_original>
// kernel: tpu_custom_call.1
$region0: #{tpu_custom_call.1}
  #allocation0 [shape = 'u32[]', space=smem, size = 0x4, offset = 0x4, fixed_abs, tag = 'smem constant byte address 0x4 - core index']
  #allocation1 [shape = 'u32[144,128]{1,0:T(1,128)}', space=vmem, size = 0x12000, scoped, tag = 'internal scratch']
  %s0 = inlined_call_operand.hbm [shape: f32[8,32], index: 0, kind: input, shape index: {}]
  %s1 = inlined_call_operand.hbm [shape: f32[32,32], index: 1, kind: input, shape index: {}]
  %s2 = inlined_call_operand.vmem [shape: f32[1,32], index: 2, kind: input, shape index: {}]
  %s3 = inlined_call_operand.hbm [shape: f32[32,128], index: 3, kind: input, shape index: {}]
  %s4 = inlined_call_operand.vmem [shape: f32[1,128], index: 4, kind: input, shape index: {}]
  %s5 = inlined_call_operand.vmem [shape: f32[8,4], index: 5, kind: output, shape index: {}]
  %s6 = sld [smem:[#allocation0]]
  $region42: #{tpu_custom_call.1} parent=0
    _
  %s8 = ssub.s32 1, %s6
  %s9 = scalar_select 0, %s8, %s6
  $region1: #{tpu_custom_call.1} parent=0
    #allocation2 [shape = 'u8[4096]{0}', space=vmem, size = 0x1000, scoped, tag = 'input window, operand 0, single buffered']
    #allocation3 [shape = 's32[1]{0}', space=sflag, size = 0x4, scoped, tag = 'scoped memory for tpu_custom_call.1']
    #allocation4 [shape = 'u8[16384]{0}', space=vmem, size = 0x4000, scoped, tag = 'input window, operand 1, single buffered']
    #allocation5 [shape = 's32[1]{0}', space=sflag, size = 0x4, scoped, tag = 'scoped memory for tpu_custom_call.1']
    #allocation6 [shape = 'u8[16384]{0}', space=vmem, size = 0x4000, scoped, tag = 'input window, operand 3, single buffered']
    %10 = vsyncpa [#allocation3], 0
    %11 = vsyncpa [#allocation5], 0
    // Predicated region
    $region2: #{tpu_custom_call.1} parent=1 // pred_check
      _
    $region3: #{tpu_custom_call.1} parent=1 // pred_check_branch
      %13 = sbr.rel (0) target = $region5
    $region4: #{tpu_custom_call.1} parent=1 // pred_region
      %s15 = ssub.s32 128, 128
      %16 = vsyncadd [#allocation3], %s15
      %s18 = sshll.u32 [#allocation2], 4
      %s19 = int_to_ptr.vmem [resolvable:$true] %s18
      %21 = dma.hbm_to_vmem [thread:$0]  %s0, 128, %s19, [#allocation3]
    $region5: #{tpu_custom_call.1} parent=1 // pred_fallthru
      _
    // Predicated region
    $region6: #{tpu_custom_call.1} parent=1 // pred_check
      _
    $region7: #{tpu_custom_call.1} parent=1 // pred_check_branch
      %23 = sbr.rel (0) target = $region9
    $region8: #{tpu_custom_call.1} parent=1 // pred_region
      %s25 = ssub.s32 512, 512
      %26 = vsyncadd [#allocation5], %s25
      %s27 = sshll.u32 [#allocation4], 4
      %s28 = int_to_ptr.vmem [resolvable:$true] %s27
      %33 = dma.hbm_to_vmem [thread:$0]  %s1, 512, %s28, [#allocation5], 128, 128, 8
    $region9: #{tpu_custom_call.1} parent=1 // pred_fallthru
      _
    // Predicated region
    $region10: #{tpu_custom_call.1} parent=1 // pred_check
      _
    $region11: #{tpu_custom_call.1} parent=1 // pred_check_branch
      %35 = sbr.rel (0) target = $region13
    $region12: #{tpu_custom_call.1} parent=1 // pred_region
      _
    $region13: #{tpu_custom_call.1} parent=1 // pred_fallthru
      _
    // Predicated region
    $region14: #{tpu_custom_call.1} parent=1 // pred_check
      _
    $region15: #{tpu_custom_call.1} parent=1 // pred_check_branch
      %37 = sbr.rel (0) target = $region17
    $region16: #{tpu_custom_call.1} parent=1 // pred_region
      %s39 = ssub.s32 512, 512
      %40 = vsyncadd [#allocation5], %s39
      %s41 = sshll.u32 [#allocation6], 4
      %s42 = int_to_ptr.vmem [resolvable:$true] %s41
      %47 = dma.hbm_to_vmem [thread:$0]  %s3, 512, %s42, [#allocation5], 128, 128, 8
    $region17: #{tpu_custom_call.1} parent=1 // pred_fallthru
      _
    // Predicated region
    $region18: #{tpu_custom_call.1} parent=1 // pred_check
      _
    $region19: #{tpu_custom_call.1} parent=1 // pred_check_branch
      %49 = sbr.rel (0) target = $region21
    $region20: #{tpu_custom_call.1} parent=1 // pred_region
      _
    $region21: #{tpu_custom_call.1} parent=1 // pred_fallthru
      _
    // Predicated region
    $region22: #{tpu_custom_call.1} parent=1 // pred_check
      _
    $region23: #{tpu_custom_call.1} parent=1 // pred_check_branch
      %51 = sbr.rel (0) target = $region25
    $region24: #{tpu_custom_call.1} parent=1 // pred_region
      %52 = dma.done [#allocation3], 128
    $region25: #{tpu_custom_call.1} parent=1 // pred_fallthru
      _
    // Predicated region
    $region26: #{tpu_custom_call.1} parent=1 // pred_check
      _
    $region27: #{tpu_custom_call.1} parent=1 // pred_check_branch
      %54 = sbr.rel (0) target = $region29
    $region28: #{tpu_custom_call.1} parent=1 // pred_region
      %55 = dma.done [#allocation5], 512
    $region29: #{tpu_custom_call.1} parent=1 // pred_fallthru
      _
    // Predicated region
    $region30: #{tpu_custom_call.1} parent=1 // pred_check
      _
    $region31: #{tpu_custom_call.1} parent=1 // pred_check_branch
      %57 = sbr.rel (0) target = $region33
    $region32: #{tpu_custom_call.1} parent=1 // pred_region
      %58 = dma.done [#allocation5], 512
    $region33: #{tpu_custom_call.1} parent=1 // pred_fallthru
      _
    %v59 = vld [vmem:[#allocation2] sm:$0xff]
    %v60 = vld [vmem:[#allocation4] sm:$0xff]
    %v61 = vld [vmem:[#allocation4 + $0x8] sm:$0xff]
    %v62 = vld [vmem:[#allocation4 + $0x10] sm:$0xff]
    %v63 = vld [vmem:[#allocation4 + $0x18] sm:$0xff]
    %v64 = vld [vmem:[%s2] sm:$0x1]
    %v66 = vlaneseq
    %v67 = vshrl.u32 %v66, 7
    %v68 = vsub.s32 0, %v67
    %v69 = vrot.slane %v64, %v68
    %vm71 = vcmask 261120
    %v73 = vsel %vm71, %v59, 0
    %75 = vmatprep.subr.mxu0 0.0
    %76 = vmatpush1.msra.mxu0 %v60
    %77 = vmatprep.subr.mxu0 0.0
    %78 = vmatpush1.msra.mxu0 %v61
    %79 = vmatprep.subr.mxu0 0.0
    %80 = vmatpush1.msra.mxu0 %v62
    %81 = vmatprep.subr.mxu0 0.0
    %82 = vmatpush1.msra.mxu0 %v63
    %83 = vmatprep.subr.mxu0 0.0
    %84 = vmatpush1.msra.mxu0 0.0
    %85 = vmatprep.subr.mxu0 0.0
    %86 = vmatpush1.msra.mxu0 0.0
    %87 = vmatprep.subr.mxu0 0.0
    %88 = vmatpush1.msra.mxu0 0.0
    %89 = vmatprep.subr.mxu0 0.0
    %90 = vmatpush1.msra.mxu0 0.0
    %91 = vmatprep.subr.mxu0 0.0
    %92 = vmatpush1.msra.mxu0 0.0
    %93 = vmatprep.subr.mxu0 0.0
    %94 = vmatpush1.msra.mxu0 0.0
    %95 = vmatprep.subr.mxu0 0.0
    %96 = vmatpush1.msra.mxu0 0.0
    %97 = vmatprep.subr.mxu0 0.0
    %98 = vmatpush1.msra.mxu0 0.0
    %99 = vmatprep.subr.mxu0 0.0
    %100 = vmatpush1.msra.mxu0 0.0
    %101 = vmatprep.subr.mxu0 0.0
    %102 = vmatpush1.msra.mxu0 0.0
    %103 = vmatprep.subr.mxu0 0.0
    %104 = vmatpush1.msra.mxu0 0.0
    %105 = vmatprep.subr.mxu0 0.0
    %106 = vmatpush1.msra.mxu0 0.0
    %107 = vmatprep.subr.mxu0 0.0
    %108 = vmatpush1.msra.mxu0 0.0
    %109 = vmatprep.subr.mxu0 0.0
    %110 = vmatpush1.msra.mxu0 0.0
    %111 = vmatprep.subr.mxu0 0.0
    %112 = vmatpush1.msra.mxu0 0.0
    %113 = vmatprep.subr.mxu0 0.0
    %114 = vmatpush1.msra.mxu0 0.0
    %115 = vmatprep.subr.mxu0 0.0
    %116 = vmatpush1.msra.mxu0 0.0
    %117 = vmatprep.subr.mxu0 0.0
    %118 = vmatpush1.msra.mxu0 0.0
    %119 = vmatprep.subr.mxu0 0.0
    %120 = vmatpush1.msra.mxu0 0.0
    %121 = vmatprep.subr.mxu0 0.0
    %122 = vmatpush1.msra.mxu0 0.0
    %123 = vmatprep.subr.mxu0 0.0
    %124 = vmatpush1.msra.mxu0 0.0
    %125 = vmatprep.subr.mxu0 0.0
    %126 = vmatpush1.msra.mxu0 0.0
    %127 = vmatprep.subr.mxu0 0.0
    %128 = vmatpush1.msra.mxu0 0.0
    %129 = vmatprep.subr.mxu0 0.0
    %130 = vmatpush1.msra.mxu0 0.0
    %131 = vmatprep.subr.mxu0 0.0
    %132 = vmatpush1.msra.mxu0 0.0
    %133 = vmatprep.subr.mxu0 0.0
    %134 = vmatpush1.msra.mxu0 0.0
    %135 = vmatprep.subr.mxu0 0.0
    %136 = vmatpush1.msra.mxu0 0.0
    %137 = vmatprep.subr.mxu0 0.0
    %138 = vmatpush1.msra.mxu0 0.0
    %139 = vmatprep.mubr.f32.mxu0 0.0
    %140 = vmatmul.mubr.f32.gmra.mrb[0].mxu0 %v73
    %v141 = vpop.f32.mrb[0].mxu0
    %v142 = vadd.f32 %v69, %v141
    %v143 = vpop.f32.mrb[0].mxu0
    %144 = vdwg.mxu0
    %v145 = vmax.f32 %v142, 0.0
    %v146 = vld [vmem:[#allocation6] sm:$0xff]
    %v147 = vld [vmem:[#allocation6 + $0x8] sm:$0xff]
    %v148 = vld [vmem:[#allocation6 + $0x10] sm:$0xff]
    %v149 = vld [vmem:[#allocation6 + $0x18] sm:$0xff]
    %v150 = vld [vmem:[%s4] sm:$0x1]
    %v152 = vlaneseq
    %v153 = vshrl.u32 %v152, 7
    %v154 = vsub.s32 0, %v153
    %v155 = vrot.slane %v150, %v154
    %v158 = vsel %vm71, %v145, 0
    %160 = vmatprep.subr.mxu0 0.0
    %161 = vmatpush1.msra.mxu0 %v146
    %162 = vmatprep.subr.mxu0 0.0
    %163 = vmatpush1.msra.mxu0 %v147
    %164 = vmatprep.subr.mxu0 0.0
    %165 = vmatpush1.msra.mxu0 %v148
    %166 = vmatprep.subr.mxu0 0.0
    %167 = vmatpush1.msra.mxu0 %v149
    %168 = vmatprep.subr.mxu0 0.0
    %169 = vmatpush1.msra.mxu0 0.0
    %170 = vmatprep.subr.mxu0 0.0
    %171 = vmatpush1.msra.mxu0 0.0
    %172 = vmatprep.subr.mxu0 0.0
    %173 = vmatpush1.msra.mxu0 0.0
    %174 = vmatprep.subr.mxu0 0.0
    %175 = vmatpush1.msra.mxu0 0.0
    %176 = vmatprep.subr.mxu0 0.0
    %177 = vmatpush1.msra.mxu0 0.0
    %178 = vmatprep.subr.mxu0 0.0
    %179 = vmatpush1.msra.mxu0 0.0
    %180 = vmatprep.subr.mxu0 0.0
    %181 = vmatpush1.msra.mxu0 0.0
    %182 = vmatprep.subr.mxu0 0.0
    %183 = vmatpush1.msra.mxu0 0.0
    %184 = vmatprep.subr.mxu0 0.0
    %185 = vmatpush1.msra.mxu0 0.0
    %186 = vmatprep.subr.mxu0 0.0
    %187 = vmatpush1.msra.mxu0 0.0
    %188 = vmatprep.subr.mxu0 0.0
    %189 = vmatpush1.msra.mxu0 0.0
    %190 = vmatprep.subr.mxu0 0.0
    %191 = vmatpush1.msra.mxu0 0.0
    %192 = vmatprep.subr.mxu0 0.0
    %193 = vmatpush1.msra.mxu0 0.0
    %194 = vmatprep.subr.mxu0 0.0
    %195 = vmatpush1.msra.mxu0 0.0
    %196 = vmatprep.subr.mxu0 0.0
    %197 = vmatpush1.msra.mxu0 0.0
    %198 = vmatprep.subr.mxu0 0.0
    %199 = vmatpush1.msra.mxu0 0.0
    %200 = vmatprep.subr.mxu0 0.0
    %201 = vmatpush1.msra.mxu0 0.0
    %202 = vmatprep.subr.mxu0 0.0
    %203 = vmatpush1.msra.mxu0 0.0
    %204 = vmatprep.subr.mxu0 0.0
    %205 = vmatpush1.msra.mxu0 0.0
    %206 = vmatprep.subr.mxu0 0.0
    %207 = vmatpush1.msra.mxu0 0.0
    %208 = vmatprep.subr.mxu0 0.0
    %209 = vmatpush1.msra.mxu0 0.0
    %210 = vmatprep.subr.mxu0 0.0
    %211 = vmatpush1.msra.mxu0 0.0
    %212 = vmatprep.subr.mxu0 0.0
    %213 = vmatpush1.msra.mxu0 0.0
    %214 = vmatprep.subr.mxu0 0.0
    %215 = vmatpush1.msra.mxu0 0.0
    %216 = vmatprep.subr.mxu0 0.0
    %217 = vmatpush1.msra.mxu0 0.0
    %218 = vmatprep.subr.mxu0 0.0
    %219 = vmatpush1.msra.mxu0 0.0
    %220 = vmatprep.subr.mxu0 0.0
    %221 = vmatpush1.msra.mxu0 0.0
    %222 = vmatprep.subr.mxu0 0.0
    %223 = vmatpush1.msra.mxu0 0.0
    %224 = vmatprep.mubr.f32.mxu0 0.0
    %225 = vmatmul.mubr.f32.gmra.mrb[0].mxu0 %v158
    %v226 = vpop.f32.mrb[0].mxu0
    %v227 = vadd.f32 %v155, %v226
    %v228 = vpop.f32.mrb[0].mxu0
    %229 = vdwg.mxu0
    %vm230 = vcmask 31744
    %231 = vst.msk [vmem:[%s5] sm:$0xff] %vm230, %v227
    // Predicated region
    $region34: #{tpu_custom_call.1} parent=1 // pred_check
      _
    $region35: #{tpu_custom_call.1} parent=1 // pred_check_branch
      %233 = sbr.rel (0) target = $region37
    $region36: #{tpu_custom_call.1} parent=1 // pred_region
      _
    $region37: #{tpu_custom_call.1} parent=1 // pred_fallthru
      _
    // Predicated region
    $region38: #{tpu_custom_call.1} parent=1 // pred_check
      _
    $region39: #{tpu_custom_call.1} parent=1 // pred_check_branch
      %235 = sbr.rel (0) target = $region41
    $region40: #{tpu_custom_call.1} parent=1 // pred_region
      _
    $region41: #{tpu_custom_call.1} parent=1 // pred_fallthru
      _
    %236 = vsyncpa [#allocation3], 1
    %237 = vsyncpa [#allocation5], 1

</llo_original>
